<compile_context>
chip_gen: v6e
topology: v6e:2x2x1
jax: 0.10.0
libtpu: 0.0.40
codegen_flags: <defaults>
</compile_context>

<pallas_src>
import functools

import jax
import jax.numpy as jnp
import numpy as np
from jax.experimental import pallas as pl
from jax.experimental.pallas import tpu as pltpu

_SUBLANE = 8
_LANE = 128


def _round_up(n, m):
    return ((n + m - 1) // m) * m


def _lstm_fc_kernel(x_ref, w_lstm_ref, w_head_ref, b_ref, out_ref,
                    *, batch_pad, seq_len, hidden, in_pad, head_w):
    B, T, H = batch_pad, seq_len, hidden
    G = 4 * H
    f32 = jnp.float32

    # Unpack the packed weight slabs (static, sublane-aligned row slices).
    wih = w_lstm_ref[0:in_pad, :]                 # (I_pad, 4H)   g cols pre-scaled x2
    whh = w_lstm_ref[in_pad:in_pad + H, :]        # (H, 4H)       g cols pre-scaled x2
    b_lstm = b_ref[0:1, 0:G]                      # (1, 4H)       g cols pre-scaled x2

    # Hoisted input projection: one MXU call covering every timestep, bias folded in.
    # x_ref is time-major (T*B, I_pad); row index = t*B + b.
    xproj = jnp.dot(x_ref[...], wih, preferred_element_type=f32) + b_lstm   # (T*B, 4H)

    h = jnp.zeros((B, H), f32)
    c = jnp.zeros((B, H), f32)

    # Recurrence: fully unrolled (T is small/static); each xproj slice is a whole
    # (8, 128) tile because B == 8 sublanes.  For large T, switch to
    # lax.fori_loop(..., unroll=4/8) to bound code size and vreg live ranges.
    for t in range(T):
        gates = xproj[t * B:(t + 1) * B, :] + jnp.dot(
            h, whh, preferred_element_type=f32)                  # (B, 4H)

        # Single EUP pass over all 4H lanes; PyTorch gate order: i, f, g, o.
        sig = jax.nn.sigmoid(gates)
        i_g = sig[:, 0 * H:1 * H]
        f_g = sig[:, 1 * H:2 * H]
        g_g = 2.0 * sig[:, 2 * H:3 * H] - 1.0     # tanh(x) = 2*sigmoid(2x) - 1 (pre-scaled)
        o_g = sig[:, 3 * H:4 * H]

        c = f_g * c + i_g * g_g
        h = o_g * jnp.tanh(c)

    # Fused FC head on hn[-1]; widths zero-padded to head_w (=128) lanes, so the final
    # store is one unmasked lane-dense (8, 128) vst.
    w1 = w_head_ref[0:H, :]                       # (H, head_w)
    w2 = w_head_ref[H:H + head_w, :]              # (head_w, head_w)
    z = jnp.maximum(jnp.dot(h, w1, preferred_element_type=f32) + b_ref[1:2, 0:head_w],
                    0.0)
    out_ref[...] = (jnp.dot(z, w2, preferred_element_type=f32) + b_ref[2:3, 0:head_w])


def prepare_params(params):
    """One-time weight layout prep (off the hot path): transposes, lane padding,
    b_ih + b_hh combine, and the g-gate x2 pre-scale for the sigmoid identity."""
    f32 = jnp.float32
    H = params["w_hh"].shape[1]
    I = params["w_ih"].shape[1]
    F = params["w1"].shape[0]                     # FC hidden width (32)
    E = params["w2"].shape[0]                     # embedding_size
    G = 4 * H

    I_pad = _round_up(max(I, _SUBLANE), _SUBLANE)
    F_pad = _round_up(F, _LANE)
    E_pad = _round_up(E, _LANE)
    head_w = max(F_pad, E_pad)
    b_w = max(G, head_w)

    # Pre-scale the g-gate columns (2H:3H) by 2 so the kernel can use
    # tanh(x) = 2*sigmoid(2x) - 1 with a single sigmoid pass.
    g_scale = jnp.ones((1, G), f32).at[:, 2 * H:3 * H].set(2.0)

    wih_t = params["w_ih"].T.astype(f32) * g_scale                    # (I, 4H)
    whh_t = params["w_hh"].T.astype(f32) * g_scale                    # (H, 4H)
    b_lstm = (params["b_ih"] + params["b_hh"]).astype(f32).reshape(1, G) * g_scale

    # Packed LSTM slab: rows [0:I_pad) = W_ih^T (zero-padded rows), [I_pad:I_pad+H) = W_hh^T.
    w_lstm = jnp.zeros((I_pad + H, G), f32)
    w_lstm = w_lstm.at[:I, :].set(wih_t)
    w_lstm = w_lstm.at[I_pad:I_pad + H, :].set(whh_t)

    # Packed FC-head slab: rows [0:H) = W1^T, rows [H:H+head_w) = W2^T, lane-padded.
    w_head = jnp.zeros((H + head_w, head_w), f32)
    w_head = w_head.at[:H, :F].set(params["w1"].T.astype(f32))
    w_head = w_head.at[H:H + F, :E].set(params["w2"].T.astype(f32))

    # Packed biases (one DMA): row 0 = combined LSTM bias, row 1 = b1, row 2 = b2.
    biases = jnp.zeros((_SUBLANE, b_w), f32)
    biases = biases.at[0, :G].set(b_lstm[0])
    biases = biases.at[1, :F].set(params["b1"].astype(f32))
    biases = biases.at[2, :E].set(params["b2"].astype(f32))

    dims = dict(input_size=I, hidden=H, fc=F, emb=E, in_pad=I_pad, head_w=head_w)
    return {"w_lstm": w_lstm, "w_head": w_head, "biases": biases, "dims": dims}


def music_rnn_forward(x, prepped):
    """x: (B, T, input_size) float32; prepped: output of prepare_params()."""
    d = prepped["dims"]
    B, T, I = x.shape
    H, in_pad, head_w, E = d["hidden"], d["in_pad"], d["head_w"], d["emb"]
    f32 = jnp.float32

    # Pad batch to a full 8-sublane tile; pad input lanes to in_pad; go time-major.
    B_pad = _round_up(max(B, _SUBLANE), _SUBLANE)
    x_p = jnp.zeros((B_pad, T, in_pad), f32).at[:B, :, :I].set(x.astype(f32))
    x2d = jnp.transpose(x_p, (1, 0, 2)).reshape(T * B_pad, in_pad)

    kernel = functools.partial(
        _lstm_fc_kernel, batch_pad=B_pad, seq_len=T, hidden=H,
        in_pad=in_pad, head_w=head_w)

    vmem = pl.BlockSpec(memory_space=pltpu.MemorySpace.VMEM)

    # No grid: everything (a few KiB) fits in VMEM; single invocation, 4 dense input DMAs.
    out_pad = pl.pallas_call(
        kernel,
        out_shape=jax.ShapeDtypeStruct((B_pad, head_w), f32),
        in_specs=[vmem, vmem, vmem, vmem],
        out_specs=vmem,
    )(x2d, prepped["w_lstm"], prepped["w_head"], prepped["biases"])

    return out_pad[:B, :E]


def _reference_forward(x, params):
    """Pure-JAX reference matching torch LSTM + FC semantics (unmodified weights)."""
    H = params["w_hh"].shape[1]
    wih, whh = params["w_ih"], params["w_hh"]
    b = params["b_ih"] + params["b_hh"]

    def step(carry, x_t):
        h, c = carry
        gates = x_t @ wih.T + h @ whh.T + b
        i = jax.nn.sigmoid(gates[:, 0 * H:1 * H])
        f = jax.nn.sigmoid(gates[:, 1 * H:2 * H])
        g = jnp.tanh(gates[:, 2 * H:3 * H])
        o = jax.nn.sigmoid(gates[:, 3 * H:4 * H])
        c = f * c + i * g
        h = o * jnp.tanh(c)
        return (h, c), None

    B = x.shape[0]
    h0 = jnp.zeros((B, H), jnp.float32)
    (hT, _), _ = jax.lax.scan(step, (h0, h0), jnp.swapaxes(x, 0, 1))
    z = jnp.maximum(hT @ params["w1"].T + params["b1"], 0.0)
    return z @ params["w2"].T + params["b2"]


def make_params(key, input_size, hidden_size, embedding_size):
    ks = jax.random.split(key, 8)
    k_lstm = 1.0 / np.sqrt(hidden_size)
    u = lambda k, shape, s: jax.random.uniform(k, shape, jnp.float32, -s, s)
    return {
        "w_ih": u(ks[0], (4 * hidden_size, input_size), k_lstm),
        "w_hh": u(ks[1], (4 * hidden_size, hidden_size), k_lstm),
        "b_ih": u(ks[2], (4 * hidden_size,), k_lstm),
        "b_hh": u(ks[3], (4 * hidden_size,), k_lstm),
        "w1": u(ks[4], (32, hidden_size), 1.0 / np.sqrt(hidden_size)),
        "b1": u(ks[5], (32,), 1.0 / np.sqrt(hidden_size)),
        "w2": u(ks[6], (embedding_size, 32), 1.0 / np.sqrt(32)),
        "b2": u(ks[7], (embedding_size,), 1.0 / np.sqrt(32)),
    }


if __name__ == "__main__":
    B, T = 2, 8
    input_size, hidden_size, embedding_size = 16, 32, 8

    key = jax.random.PRNGKey(0)
    kx, kp = jax.random.split(key)
    x = jax.random.normal(kx, (B, T, input_size), jnp.float32)
    params = make_params(kp, input_size, hidden_size, embedding_size)

    # Weight preprocessing is done once here, off the per-forward hot path.
    prepped = prepare_params(params)
    fwd = jax.jit(functools.partial(music_rnn_forward, prepped=prepped))

    out = jax.block_until_ready(fwd(x))

    ref = jax.block_until_ready(_reference_forward(x, params))
    np.testing.assert_allclose(np.asarray(out), np.asarray(ref), rtol=1e-5, atol=2e-5)

    print("KERNEL_OK")
</pallas_src>

<mosaic_0001>
module attributes {stable_mosaic.version = 11 : i64} {
  func.func @_lstm_fc_kernel(%arg0: memref<64x16xf32, #tpu.memory_space<vmem>>, %arg1: memref<48x128xf32, #tpu.memory_space<vmem>>, %arg2: memref<160x128xf32, #tpu.memory_space<vmem>>, %arg3: memref<8x128xf32, #tpu.memory_space<vmem>>, %arg4: memref<8x128xf32, #tpu.memory_space<vmem>>) attributes {dimension_semantics = [], scalar_prefetch = 0 : i64, scratch_operands = 0 : i64, tpu.core_type = #tpu.core_type<tc>} {
    %c0 = arith.constant 0 : index
    %c0_0 = arith.constant 0 : index
    %0 = vector.load %arg1[%c0, %c0_0] : memref<48x128xf32, #tpu.memory_space<vmem>>, vector<16x128xf32>
    %c16 = arith.constant 16 : index
    %c0_1 = arith.constant 0 : index
    %1 = vector.load %arg1[%c16, %c0_1] : memref<48x128xf32, #tpu.memory_space<vmem>>, vector<32x128xf32>
    %c0_2 = arith.constant 0 : index
    %c0_3 = arith.constant 0 : index
    %2 = vector.load %arg3[%c0_2, %c0_3] : memref<8x128xf32, #tpu.memory_space<vmem>>, vector<1x128xf32>
    %c0_4 = arith.constant 0 : index
    %c0_5 = arith.constant 0 : index
    %3 = vector.load %arg0[%c0_4, %c0_5] : memref<64x16xf32, #tpu.memory_space<vmem>>, vector<64x16xf32>
    %cst = arith.constant dense<0.000000e+00> : vector<64x128xf32>
    %4 = tpu.matmul %3, %0, %cst {dimension_numbers = #tpu.dot_dimension_numbers<[1], [0], [0], [1], [0, 0, 1, 1], [], []>} : vector<64x16xf32>, vector<16x128xf32>, vector<64x128xf32> -> vector<64x128xf32>
    %5 = vector.broadcast %2 : vector<1x128xf32> to vector<64x128xf32>
    %6 = arith.addf %4, %5 : vector<64x128xf32>
    %cst_6 = arith.constant 0.000000e+00 : f32
    %7 = vector.broadcast %cst_6 : f32 to vector<8x32xf32>
    %cst_7 = arith.constant 0.000000e+00 : f32
    %8 = vector.broadcast %cst_7 : f32 to vector<8x32xf32>
    %9 = vector.extract_strided_slice %6 {offsets = [0, 0], sizes = [8, 128], strides = [1, 1]} : vector<64x128xf32> to vector<8x128xf32>
    %cst_8 = arith.constant dense<0.000000e+00> : vector<8x128xf32>
    %10 = tpu.matmul %7, %1, %cst_8 {dimension_numbers = #tpu.dot_dimension_numbers<[1], [0], [0], [1], [0, 0, 1, 1], [], []>} : vector<8x32xf32>, vector<32x128xf32>, vector<8x128xf32> -> vector<8x128xf32>
    %11 = arith.addf %9, %10 : vector<8x128xf32>
    %12 = arith.negf %11 : vector<8x128xf32>
    %13 = math.exp %12 : vector<8x128xf32>
    %cst_9 = arith.constant 1.000000e+00 : f32
    %14 = vector.broadcast %cst_9 : f32 to vector<8x128xf32>
    %15 = arith.addf %14, %13 : vector<8x128xf32>
    %16 = arith.divf %14, %15 : vector<8x128xf32>
    %17 = vector.extract_strided_slice %16 {offsets = [0, 0], sizes = [8, 32], strides = [1, 1]} : vector<8x128xf32> to vector<8x32xf32>
    %18 = vector.extract_strided_slice %16 {offsets = [0, 32], sizes = [8, 32], strides = [1, 1]} : vector<8x128xf32> to vector<8x32xf32>
    %19 = vector.extract_strided_slice %16 {offsets = [0, 64], sizes = [8, 32], strides = [1, 1]} : vector<8x128xf32> to vector<8x32xf32>
    %cst_10 = arith.constant 2.000000e+00 : f32
    %20 = vector.broadcast %cst_10 : f32 to vector<8x32xf32>
    %21 = arith.mulf %20, %19 : vector<8x32xf32>
    %cst_11 = arith.constant 1.000000e+00 : f32
    %22 = vector.broadcast %cst_11 : f32 to vector<8x32xf32>
    %23 = arith.subf %21, %22 : vector<8x32xf32>
    %24 = vector.extract_strided_slice %16 {offsets = [0, 96], sizes = [8, 32], strides = [1, 1]} : vector<8x128xf32> to vector<8x32xf32>
    %25 = arith.mulf %18, %8 : vector<8x32xf32>
    %26 = arith.mulf %17, %23 : vector<8x32xf32>
    %27 = arith.addf %25, %26 : vector<8x32xf32>
    %28 = math.tanh %27 : vector<8x32xf32>
    %29 = arith.mulf %24, %28 : vector<8x32xf32>
    %30 = vector.extract_strided_slice %6 {offsets = [8, 0], sizes = [8, 128], strides = [1, 1]} : vector<64x128xf32> to vector<8x128xf32>
    %cst_12 = arith.constant dense<0.000000e+00> : vector<8x128xf32>
    %31 = tpu.matmul %29, %1, %cst_12 {dimension_numbers = #tpu.dot_dimension_numbers<[1], [0], [0], [1], [0, 0, 1, 1], [], []>} : vector<8x32xf32>, vector<32x128xf32>, vector<8x128xf32> -> vector<8x128xf32>
    %32 = arith.addf %30, %31 : vector<8x128xf32>
    %33 = arith.negf %32 : vector<8x128xf32>
    %34 = math.exp %33 : vector<8x128xf32>
    %cst_13 = arith.constant 1.000000e+00 : f32
    %35 = vector.broadcast %cst_13 : f32 to vector<8x128xf32>
    %36 = arith.addf %35, %34 : vector<8x128xf32>
    %37 = arith.divf %35, %36 : vector<8x128xf32>
    %38 = vector.extract_strided_slice %37 {offsets = [0, 0], sizes = [8, 32], strides = [1, 1]} : vector<8x128xf32> to vector<8x32xf32>
    %39 = vector.extract_strided_slice %37 {offsets = [0, 32], sizes = [8, 32], strides = [1, 1]} : vector<8x128xf32> to vector<8x32xf32>
    %40 = vector.extract_strided_slice %37 {offsets = [0, 64], sizes = [8, 32], strides = [1, 1]} : vector<8x128xf32> to vector<8x32xf32>
    %cst_14 = arith.constant 2.000000e+00 : f32
    %41 = vector.broadcast %cst_14 : f32 to vector<8x32xf32>
    %42 = arith.mulf %41, %40 : vector<8x32xf32>
    %cst_15 = arith.constant 1.000000e+00 : f32
    %43 = vector.broadcast %cst_15 : f32 to vector<8x32xf32>
    %44 = arith.subf %42, %43 : vector<8x32xf32>
    %45 = vector.extract_strided_slice %37 {offsets = [0, 96], sizes = [8, 32], strides = [1, 1]} : vector<8x128xf32> to vector<8x32xf32>
    %46 = arith.mulf %39, %27 : vector<8x32xf32>
    %47 = arith.mulf %38, %44 : vector<8x32xf32>
    %48 = arith.addf %46, %47 : vector<8x32xf32>
    %49 = math.tanh %48 : vector<8x32xf32>
    %50 = arith.mulf %45, %49 : vector<8x32xf32>
    %51 = vector.extract_strided_slice %6 {offsets = [16, 0], sizes = [8, 128], strides = [1, 1]} : vector<64x128xf32> to vector<8x128xf32>
    %cst_16 = arith.constant dense<0.000000e+00> : vector<8x128xf32>
    %52 = tpu.matmul %50, %1, %cst_16 {dimension_numbers = #tpu.dot_dimension_numbers<[1], [0], [0], [1], [0, 0, 1, 1], [], []>} : vector<8x32xf32>, vector<32x128xf32>, vector<8x128xf32> -> vector<8x128xf32>
    %53 = arith.addf %51, %52 : vector<8x128xf32>
    %54 = arith.negf %53 : vector<8x128xf32>
    %55 = math.exp %54 : vector<8x128xf32>
    %cst_17 = arith.constant 1.000000e+00 : f32
    %56 = vector.broadcast %cst_17 : f32 to vector<8x128xf32>
    %57 = arith.addf %56, %55 : vector<8x128xf32>
    %58 = arith.divf %56, %57 : vector<8x128xf32>
    %59 = vector.extract_strided_slice %58 {offsets = [0, 0], sizes = [8, 32], strides = [1, 1]} : vector<8x128xf32> to vector<8x32xf32>
    %60 = vector.extract_strided_slice %58 {offsets = [0, 32], sizes = [8, 32], strides = [1, 1]} : vector<8x128xf32> to vector<8x32xf32>
    %61 = vector.extract_strided_slice %58 {offsets = [0, 64], sizes = [8, 32], strides = [1, 1]} : vector<8x128xf32> to vector<8x32xf32>
    %cst_18 = arith.constant 2.000000e+00 : f32
    %62 = vector.broadcast %cst_18 : f32 to vector<8x32xf32>
    %63 = arith.mulf %62, %61 : vector<8x32xf32>
    %cst_19 = arith.constant 1.000000e+00 : f32
    %64 = vector.broadcast %cst_19 : f32 to vector<8x32xf32>
    %65 = arith.subf %63, %64 : vector<8x32xf32>
    %66 = vector.extract_strided_slice %58 {offsets = [0, 96], sizes = [8, 32], strides = [1, 1]} : vector<8x128xf32> to vector<8x32xf32>
    %67 = arith.mulf %60, %48 : vector<8x32xf32>
    %68 = arith.mulf %59, %65 : vector<8x32xf32>
    %69 = arith.addf %67, %68 : vector<8x32xf32>
    %70 = math.tanh %69 : vector<8x32xf32>
    %71 = arith.mulf %66, %70 : vector<8x32xf32>
    %72 = vector.extract_strided_slice %6 {offsets = [24, 0], sizes = [8, 128], strides = [1, 1]} : vector<64x128xf32> to vector<8x128xf32>
    %cst_20 = arith.constant dense<0.000000e+00> : vector<8x128xf32>
    %73 = tpu.matmul %71, %1, %cst_20 {dimension_numbers = #tpu.dot_dimension_numbers<[1], [0], [0], [1], [0, 0, 1, 1], [], []>} : vector<8x32xf32>, vector<32x128xf32>, vector<8x128xf32> -> vector<8x128xf32>
    %74 = arith.addf %72, %73 : vector<8x128xf32>
    %75 = arith.negf %74 : vector<8x128xf32>
    %76 = math.exp %75 : vector<8x128xf32>
    %cst_21 = arith.constant 1.000000e+00 : f32
    %77 = vector.broadcast %cst_21 : f32 to vector<8x128xf32>
    %78 = arith.addf %77, %76 : vector<8x128xf32>
    %79 = arith.divf %77, %78 : vector<8x128xf32>
    %80 = vector.extract_strided_slice %79 {offsets = [0, 0], sizes = [8, 32], strides = [1, 1]} : vector<8x128xf32> to vector<8x32xf32>
    %81 = vector.extract_strided_slice %79 {offsets = [0, 32], sizes = [8, 32], strides = [1, 1]} : vector<8x128xf32> to vector<8x32xf32>
    %82 = vector.extract_strided_slice %79 {offsets = [0, 64], sizes = [8, 32], strides = [1, 1]} : vector<8x128xf32> to vector<8x32xf32>
    %cst_22 = arith.constant 2.000000e+00 : f32
    %83 = vector.broadcast %cst_22 : f32 to vector<8x32xf32>
    %84 = arith.mulf %83, %82 : vector<8x32xf32>
    %cst_23 = arith.constant 1.000000e+00 : f32
    %85 = vector.broadcast %cst_23 : f32 to vector<8x32xf32>
    %86 = arith.subf %84, %85 : vector<8x32xf32>
    %87 = vector.extract_strided_slice %79 {offsets = [0, 96], sizes = [8, 32], strides = [1, 1]} : vector<8x128xf32> to vector<8x32xf32>
    %88 = arith.mulf %81, %69 : vector<8x32xf32>
    %89 = arith.mulf %80, %86 : vector<8x32xf32>
    %90 = arith.addf %88, %89 : vector<8x32xf32>
    %91 = math.tanh %90 : vector<8x32xf32>
    %92 = arith.mulf %87, %91 : vector<8x32xf32>
    %93 = vector.extract_strided_slice %6 {offsets = [32, 0], sizes = [8, 128], strides = [1, 1]} : vector<64x128xf32> to vector<8x128xf32>
    %cst_24 = arith.constant dense<0.000000e+00> : vector<8x128xf32>
    %94 = tpu.matmul %92, %1, %cst_24 {dimension_numbers = #tpu.dot_dimension_numbers<[1], [0], [0], [1], [0, 0, 1, 1], [], []>} : vector<8x32xf32>, vector<32x128xf32>, vector<8x128xf32> -> vector<8x128xf32>
    %95 = arith.addf %93, %94 : vector<8x128xf32>
    %96 = arith.negf %95 : vector<8x128xf32>
    %97 = math.exp %96 : vector<8x128xf32>
    %cst_25 = arith.constant 1.000000e+00 : f32
    %98 = vector.broadcast %cst_25 : f32 to vector<8x128xf32>
    %99 = arith.addf %98, %97 : vector<8x128xf32>
    %100 = arith.divf %98, %99 : vector<8x128xf32>
    %101 = vector.extract_strided_slice %100 {offsets = [0, 0], sizes = [8, 32], strides = [1, 1]} : vector<8x128xf32> to vector<8x32xf32>
    %102 = vector.extract_strided_slice %100 {offsets = [0, 32], sizes = [8, 32], strides = [1, 1]} : vector<8x128xf32> to vector<8x32xf32>
    %103 = vector.extract_strided_slice %100 {offsets = [0, 64], sizes = [8, 32], strides = [1, 1]} : vector<8x128xf32> to vector<8x32xf32>
    %cst_26 = arith.constant 2.000000e+00 : f32
    %104 = vector.broadcast %cst_26 : f32 to vector<8x32xf32>
    %105 = arith.mulf %104, %103 : vector<8x32xf32>
    %cst_27 = arith.constant 1.000000e+00 : f32
    %106 = vector.broadcast %cst_27 : f32 to vector<8x32xf32>
    %107 = arith.subf %105, %106 : vector<8x32xf32>
    %108 = vector.extract_strided_slice %100 {offsets = [0, 96], sizes = [8, 32], strides = [1, 1]} : vector<8x128xf32> to vector<8x32xf32>
    %109 = arith.mulf %102, %90 : vector<8x32xf32>
    %110 = arith.mulf %101, %107 : vector<8x32xf32>
    %111 = arith.addf %109, %110 : vector<8x32xf32>
    %112 = math.tanh %111 : vector<8x32xf32>
    %113 = arith.mulf %108, %112 : vector<8x32xf32>
    %114 = vector.extract_strided_slice %6 {offsets = [40, 0], sizes = [8, 128], strides = [1, 1]} : vector<64x128xf32> to vector<8x128xf32>
    %cst_28 = arith.constant dense<0.000000e+00> : vector<8x128xf32>
    %115 = tpu.matmul %113, %1, %cst_28 {dimension_numbers = #tpu.dot_dimension_numbers<[1], [0], [0], [1], [0, 0, 1, 1], [], []>} : vector<8x32xf32>, vector<32x128xf32>, vector<8x128xf32> -> vector<8x128xf32>
    %116 = arith.addf %114, %115 : vector<8x128xf32>
    %117 = arith.negf %116 : vector<8x128xf32>
    %118 = math.exp %117 : vector<8x128xf32>
    %cst_29 = arith.constant 1.000000e+00 : f32
    %119 = vector.broadcast %cst_29 : f32 to vector<8x128xf32>
    %120 = arith.addf %119, %118 : vector<8x128xf32>
    %121 = arith.divf %119, %120 : vector<8x128xf32>
    %122 = vector.extract_strided_slice %121 {offsets = [0, 0], sizes = [8, 32], strides = [1, 1]} : vector<8x128xf32> to vector<8x32xf32>
    %123 = vector.extract_strided_slice %121 {offsets = [0, 32], sizes = [8, 32], strides = [1, 1]} : vector<8x128xf32> to vector<8x32xf32>
    %124 = vector.extract_strided_slice %121 {offsets = [0, 64], sizes = [8, 32], strides = [1, 1]} : vector<8x128xf32> to vector<8x32xf32>
    %cst_30 = arith.constant 2.000000e+00 : f32
    %125 = vector.broadcast %cst_30 : f32 to vector<8x32xf32>
    %126 = arith.mulf %125, %124 : vector<8x32xf32>
    %cst_31 = arith.constant 1.000000e+00 : f32
    %127 = vector.broadcast %cst_31 : f32 to vector<8x32xf32>
    %128 = arith.subf %126, %127 : vector<8x32xf32>
    %129 = vector.extract_strided_slice %121 {offsets = [0, 96], sizes = [8, 32], strides = [1, 1]} : vector<8x128xf32> to vector<8x32xf32>
    %130 = arith.mulf %123, %111 : vector<8x32xf32>
    %131 = arith.mulf %122, %128 : vector<8x32xf32>
    %132 = arith.addf %130, %131 : vector<8x32xf32>
    %133 = math.tanh %132 : vector<8x32xf32>
    %134 = arith.mulf %129, %133 : vector<8x32xf32>
    %135 = vector.extract_strided_slice %6 {offsets = [48, 0], sizes = [8, 128], strides = [1, 1]} : vector<64x128xf32> to vector<8x128xf32>
    %cst_32 = arith.constant dense<0.000000e+00> : vector<8x128xf32>
    %136 = tpu.matmul %134, %1, %cst_32 {dimension_numbers = #tpu.dot_dimension_numbers<[1], [0], [0], [1], [0, 0, 1, 1], [], []>} : vector<8x32xf32>, vector<32x128xf32>, vector<8x128xf32> -> vector<8x128xf32>
    %137 = arith.addf %135, %136 : vector<8x128xf32>
    %138 = arith.negf %137 : vector<8x128xf32>
    %139 = math.exp %138 : vector<8x128xf32>
    %cst_33 = arith.constant 1.000000e+00 : f32
    %140 = vector.broadcast %cst_33 : f32 to vector<8x128xf32>
    %141 = arith.addf %140, %139 : vector<8x128xf32>
    %142 = arith.divf %140, %141 : vector<8x128xf32>
    %143 = vector.extract_strided_slice %142 {offsets = [0, 0], sizes = [8, 32], strides = [1, 1]} : vector<8x128xf32> to vector<8x32xf32>
    %144 = vector.extract_strided_slice %142 {offsets = [0, 32], sizes = [8, 32], strides = [1, 1]} : vector<8x128xf32> to vector<8x32xf32>
    %145 = vector.extract_strided_slice %142 {offsets = [0, 64], sizes = [8, 32], strides = [1, 1]} : vector<8x128xf32> to vector<8x32xf32>
    %cst_34 = arith.constant 2.000000e+00 : f32
    %146 = vector.broadcast %cst_34 : f32 to vector<8x32xf32>
    %147 = arith.mulf %146, %145 : vector<8x32xf32>
    %cst_35 = arith.constant 1.000000e+00 : f32
    %148 = vector.broadcast %cst_35 : f32 to vector<8x32xf32>
    %149 = arith.subf %147, %148 : vector<8x32xf32>
    %150 = vector.extract_strided_slice %142 {offsets = [0, 96], sizes = [8, 32], strides = [1, 1]} : vector<8x128xf32> to vector<8x32xf32>
    %151 = arith.mulf %144, %132 : vector<8x32xf32>
    %152 = arith.mulf %143, %149 : vector<8x32xf32>
    %153 = arith.addf %151, %152 : vector<8x32xf32>
    %154 = math.tanh %153 : vector<8x32xf32>
    %155 = arith.mulf %150, %154 : vector<8x32xf32>
    %156 = vector.extract_strided_slice %6 {offsets = [56, 0], sizes = [8, 128], strides = [1, 1]} : vector<64x128xf32> to vector<8x128xf32>
    %cst_36 = arith.constant dense<0.000000e+00> : vector<8x128xf32>
    %157 = tpu.matmul %155, %1, %cst_36 {dimension_numbers = #tpu.dot_dimension_numbers<[1], [0], [0], [1], [0, 0, 1, 1], [], []>} : vector<8x32xf32>, vector<32x128xf32>, vector<8x128xf32> -> vector<8x128xf32>
    %158 = arith.addf %156, %157 : vector<8x128xf32>
    %159 = arith.negf %158 : vector<8x128xf32>
    %160 = math.exp %159 : vector<8x128xf32>
    %cst_37 = arith.constant 1.000000e+00 : f32
    %161 = vector.broadcast %cst_37 : f32 to vector<8x128xf32>
    %162 = arith.addf %161, %160 : vector<8x128xf32>
    %163 = arith.divf %161, %162 : vector<8x128xf32>
    %164 = vector.extract_strided_slice %163 {offsets = [0, 0], sizes = [8, 32], strides = [1, 1]} : vector<8x128xf32> to vector<8x32xf32>
    %165 = vector.extract_strided_slice %163 {offsets = [0, 32], sizes = [8, 32], strides = [1, 1]} : vector<8x128xf32> to vector<8x32xf32>
    %166 = vector.extract_strided_slice %163 {offsets = [0, 64], sizes = [8, 32], strides = [1, 1]} : vector<8x128xf32> to vector<8x32xf32>
    %cst_38 = arith.constant 2.000000e+00 : f32
    %167 = vector.broadcast %cst_38 : f32 to vector<8x32xf32>
    %168 = arith.mulf %167, %166 : vector<8x32xf32>
    %cst_39 = arith.constant 1.000000e+00 : f32
    %169 = vector.broadcast %cst_39 : f32 to vector<8x32xf32>
    %170 = arith.subf %168, %169 : vector<8x32xf32>
    %171 = vector.extract_strided_slice %163 {offsets = [0, 96], sizes = [8, 32], strides = [1, 1]} : vector<8x128xf32> to vector<8x32xf32>
    %172 = arith.mulf %165, %153 : vector<8x32xf32>
    %173 = arith.mulf %164, %170 : vector<8x32xf32>
    %174 = arith.addf %172, %173 : vector<8x32xf32>
    %175 = math.tanh %174 : vector<8x32xf32>
    %176 = arith.mulf %171, %175 : vector<8x32xf32>
    %c0_40 = arith.constant 0 : index
    %c0_41 = arith.constant 0 : index
    %177 = vector.load %arg2[%c0_40, %c0_41] : memref<160x128xf32, #tpu.memory_space<vmem>>, vector<32x128xf32>
    %c32 = arith.constant 32 : index
    %c0_42 = arith.constant 0 : index
    %178 = vector.load %arg2[%c32, %c0_42] : memref<160x128xf32, #tpu.memory_space<vmem>>, vector<128x128xf32>
    %cst_43 = arith.constant dense<0.000000e+00> : vector<8x128xf32>
    %179 = tpu.matmul %176, %177, %cst_43 {dimension_numbers = #tpu.dot_dimension_numbers<[1], [0], [0], [1], [0, 0, 1, 1], [], []>} : vector<8x32xf32>, vector<32x128xf32>, vector<8x128xf32> -> vector<8x128xf32>
    %c1 = arith.constant 1 : index
    %c0_44 = arith.constant 0 : index
    %180 = vector.load %arg3[%c1, %c0_44] : memref<8x128xf32, #tpu.memory_space<vmem>>, vector<1x128xf32>
    %181 = vector.broadcast %180 : vector<1x128xf32> to vector<8x128xf32>
    %182 = arith.addf %179, %181 : vector<8x128xf32>
    %cst_45 = arith.constant 0.000000e+00 : f32
    %183 = vector.broadcast %cst_45 : f32 to vector<8x128xf32>
    %184 = arith.maximumf %182, %183 : vector<8x128xf32>
    %cst_46 = arith.constant dense<0.000000e+00> : vector<8x128xf32>
    %185 = tpu.matmul %184, %178, %cst_46 {dimension_numbers = #tpu.dot_dimension_numbers<[1], [0], [0], [1], [0, 0, 1, 1], [], []>} : vector<8x128xf32>, vector<128x128xf32>, vector<8x128xf32> -> vector<8x128xf32>
    %c2 = arith.constant 2 : index
    %c0_47 = arith.constant 0 : index
    %186 = vector.load %arg3[%c2, %c0_47] : memref<8x128xf32, #tpu.memory_space<vmem>>, vector<1x128xf32>
    %187 = vector.broadcast %186 : vector<1x128xf32> to vector<8x128xf32>
    %188 = arith.addf %185, %187 : vector<8x128xf32>
    %c0_48 = arith.constant 0 : index
    %c0_49 = arith.constant 0 : index
    %189 = vector.load %arg4[%c0_48, %c0_49] : memref<8x128xf32, #tpu.memory_space<vmem>>, vector<8x128xf32>
    tpu.vector_store %arg4[%c0_48, %c0_49], %188 {strides = array<i32>} : memref<8x128xf32, #tpu.memory_space<vmem>>, vector<8x128xf32>,
    return
  }
}

</mosaic_0001>

<llo_original>
// kernel: music_rnn_forward.1
$region0: #{music_rnn_forward.1}
  #allocation0 [shape = 'u32[]', space=smem, size = 0x4, offset = 0x4, fixed_abs, tag = 'smem constant byte address 0x4 - core index']
  #allocation1 [shape = 'u32[144,128]{1,0:T(1,128)}', space=vmem, size = 0x12000, scoped, tag = 'internal scratch']
  %s0 = inlined_call_operand.vmem [shape: f32[64,16], index: 0, kind: input, shape index: {}]
  %s1 = inlined_call_operand.vmem [shape: f32[48,128], index: 1, kind: input, shape index: {}]
  %s2 = inlined_call_operand.vmem [shape: f32[160,128], index: 2, kind: input, shape index: {}]
  %s3 = inlined_call_operand.hbm [shape: f32[8,128], index: 3, kind: input, shape index: {}]
  %s4 = inlined_call_operand.vmem [shape: f32[8,128], index: 4, kind: output, shape index: {}]
  %s5 = sld [smem:[#allocation0]]
  $region30: #{music_rnn_forward.1} parent=0
    _
  %s7 = ssub.s32 1, %s5
  %s8 = scalar_select 0, %s7, %s5
  $region1: #{music_rnn_forward.1} parent=0
    #allocation2 [shape = 'u8[4096]{0}', space=vmem, size = 0x1000, scoped, tag = 'input window, operand 3, single buffered']
    #allocation3 [shape = 's32[1]{0}', space=sflag, size = 0x4, scoped, tag = 'scoped memory for music_rnn_forward.1']
    %9 = vsyncpa [#allocation3], 0
    // Predicated region
    $region2: #{music_rnn_forward.1} parent=1 // pred_check
      _
    $region3: #{music_rnn_forward.1} parent=1 // pred_check_branch
      %11 = sbr.rel (0) target = $region5
    $region4: #{music_rnn_forward.1} parent=1 // pred_region
      _
    $region5: #{music_rnn_forward.1} parent=1 // pred_fallthru
      _
    // Predicated region
    $region6: #{music_rnn_forward.1} parent=1 // pred_check
      _
    $region7: #{music_rnn_forward.1} parent=1 // pred_check_branch
      %13 = sbr.rel (0) target = $region9
    $region8: #{music_rnn_forward.1} parent=1 // pred_region
      _
    $region9: #{music_rnn_forward.1} parent=1 // pred_fallthru
      _
    // Predicated region
    $region10: #{music_rnn_forward.1} parent=1 // pred_check
      _
    $region11: #{music_rnn_forward.1} parent=1 // pred_check_branch
      %15 = sbr.rel (0) target = $region13
    $region12: #{music_rnn_forward.1} parent=1 // pred_region
      _
    $region13: #{music_rnn_forward.1} parent=1 // pred_fallthru
      _
    // Predicated region
    $region14: #{music_rnn_forward.1} parent=1 // pred_check
      _
    $region15: #{music_rnn_forward.1} parent=1 // pred_check_branch
      %17 = sbr.rel (0) target = $region17
    $region16: #{music_rnn_forward.1} parent=1 // pred_region
      %s19 = ssub.s32 128, 128
      %20 = vsyncadd [#allocation3], %s19
      %s22 = sshll.u32 [#allocation2], 4
      %s23 = int_to_ptr.vmem [resolvable:$true] %s22
      %25 = dma.hbm_to_vmem [thread:$0]  %s3, 128, %s23, [#allocation3]
    $region17: #{music_rnn_forward.1} parent=1 // pred_fallthru
      _
    // Predicated region
    $region18: #{music_rnn_forward.1} parent=1 // pred_check
      _
    $region19: #{music_rnn_forward.1} parent=1 // pred_check_branch
      %27 = sbr.rel (0) target = $region21
    $region20: #{music_rnn_forward.1} parent=1 // pred_region
      %28 = dma.done [#allocation3], 128
    $region21: #{music_rnn_forward.1} parent=1 // pred_fallthru
      _
    %v29 = vld [vmem:[%s1] sm:$0xff]
    %v30 = vld [vmem:[%s1 + $0x8] sm:$0xff]
    %v31 = vld [vmem:[%s1 + $0x10] sm:$0xff]
    %v32 = vld [vmem:[%s1 + $0x18] sm:$0xff]
    %v33 = vld [vmem:[%s1 + $0x20] sm:$0xff]
    %v34 = vld [vmem:[%s1 + $0x28] sm:$0xff]
    %v35 = vld [vmem:[#allocation2] sm:$0x1]
    %v36 = vld [vmem:[%s0] sm:$0xff]
    %v37 = vld [vmem:[%s0 + $0x8] sm:$0xff]
    %v38 = vld [vmem:[%s0 + $0x10] sm:$0xff]
    %v39 = vld [vmem:[%s0 + $0x18] sm:$0xff]
    %v40 = vld [vmem:[%s0 + $0x20] sm:$0xff]
    %v41 = vld [vmem:[%s0 + $0x28] sm:$0xff]
    %v42 = vld [vmem:[%s0 + $0x30] sm:$0xff]
    %v43 = vld [vmem:[%s0 + $0x38] sm:$0xff]
    %v44 = vlaneseq
    %v45 = vshrl.u32 %v44, 7
    %v46 = vsub.s32 0, %v45
    %v47 = vrot.slane %v35, %v46
    %vm48 = vcmask 130048
    %v50 = vsel %vm48, %v36, 0
    %v53 = vsel %vm48, %v37, 0
    %v56 = vsel %vm48, %v38, 0
    %v59 = vsel %vm48, %v39, 0
    %v62 = vsel %vm48, %v40, 0
    %v65 = vsel %vm48, %v41, 0
    %v68 = vsel %vm48, %v42, 0
    %v71 = vsel %vm48, %v43, 0
    %73 = vmatprep.subr.mxu0 0.0
    %74 = vmatpush1.msra.mxu0 0.0
    %75 = vmatprep.subr.mxu0 0.0
    %76 = vmatpush1.msra.mxu0 0.0
    %77 = vmatprep.subr.mxu0 0.0
    %78 = vmatpush1.msra.mxu0 0.0
    %79 = vmatprep.subr.mxu0 0.0
    %80 = vmatpush1.msra.mxu0 0.0
    %81 = vmatprep.subr.mxu0 0.0
    %82 = vmatpush1.msra.mxu0 0.0
    %83 = vmatprep.subr.mxu0 0.0
    %84 = vmatpush1.msra.mxu0 0.0
    %85 = vmatprep.subr.mxu0 0.0
    %86 = vmatpush1.msra.mxu0 0.0
    %87 = vmatprep.subr.mxu0 0.0
    %88 = vmatpush1.msra.mxu0 0.0
    %89 = vmatprep.subr.mxu0 0.0
    %90 = vmatpush1.msra.mxu0 0.0
    %91 = vmatprep.subr.mxu0 0.0
    %92 = vmatpush1.msra.mxu0 0.0
    %93 = vmatprep.subr.mxu0 0.0
    %94 = vmatpush1.msra.mxu0 0.0
    %95 = vmatprep.subr.mxu0 0.0
    %96 = vmatpush1.msra.mxu0 0.0
    %97 = vmatprep.subr.mxu0 0.0
    %98 = vmatpush1.msra.mxu0 0.0
    %99 = vmatprep.subr.mxu0 0.0
    %100 = vmatpush1.msra.mxu0 0.0
    %101 = vmatprep.subr.mxu0 0.0
    %102 = vmatpush1.msra.mxu0 %v30
    %103 = vmatprep.subr.mxu0 0.0
    %104 = vmatpush1.msra.mxu0 %v29
    %105 = vmatprep.subr.mxu0 0.0
    %106 = vmatpush2.msra.mxu0 0.0
    %107 = vmatprep.subr.mxu0 0.0
    %108 = vmatpush2.msra.mxu0 0.0
    %109 = vmatprep.subr.mxu0 0.0
    %110 = vmatpush2.msra.mxu0 0.0
    %111 = vmatprep.subr.mxu0 0.0
    %112 = vmatpush2.msra.mxu0 0.0
    %113 = vmatprep.subr.mxu0 0.0
    %114 = vmatpush2.msra.mxu0 0.0
    %115 = vmatprep.subr.mxu0 0.0
    %116 = vmatpush2.msra.mxu0 0.0
    %117 = vmatprep.subr.mxu0 0.0
    %118 = vmatpush2.msra.mxu0 0.0
    %119 = vmatprep.subr.mxu0 0.0
    %120 = vmatpush2.msra.mxu0 0.0
    %121 = vmatprep.subr.mxu0 0.0
    %122 = vmatpush2.msra.mxu0 0.0
    %123 = vmatprep.subr.mxu0 0.0
    %124 = vmatpush2.msra.mxu0 0.0
    %125 = vmatprep.subr.mxu0 0.0
    %126 = vmatpush2.msra.mxu0 0.0
    %127 = vmatprep.subr.mxu0 0.0
    %128 = vmatpush2.msra.mxu0 0.0
    %129 = vmatprep.subr.mxu0 0.0
    %130 = vmatpush2.msra.mxu0 0.0
    %131 = vmatprep.subr.mxu0 0.0
    %132 = vmatpush2.msra.mxu0 0.0
    %133 = vmatprep.subr.mxu0 0.0
    %134 = vmatpush2.msra.mxu0 0.0
    %135 = vmatprep.subr.mxu0 0.0
    %136 = vmatpush2.msra.mxu0 0.0
    %137 = vmatprep.mubr.f32.mxu0 0.0
    %138 = vmatmul.mubr.f32.gmra.mxu0 %v50
    %v139 = vpop.f32.mrf.mxu0
    %v140 = vadd.f32 %v47, %v139
    %v141 = vpop.f32.mrf.mxu0
    %142 = vmatprep.mubr.f32.mxu0 0.0
    %143 = vmatmul.mubr.f32.gmra.mxu0 %v53
    %v144 = vpop.f32.mrf.mxu0
    %v145 = vadd.f32 %v47, %v144
    %v146 = vpop.f32.mrf.mxu0
    %147 = vmatprep.mubr.f32.mxu0 0.0
    %148 = vmatmul.mubr.f32.gmra.mxu0 %v56
    %v149 = vpop.f32.mrf.mxu0
    %v150 = vadd.f32 %v47, %v149
    %v151 = vpop.f32.mrf.mxu0
    %152 = vmatprep.mubr.f32.mxu0 0.0
    %153 = vmatmul.mubr.f32.gmra.mxu0 %v59
    %v154 = vpop.f32.mrf.mxu0
    %v155 = vadd.f32 %v47, %v154
    %v156 = vpop.f32.mrf.mxu0
    %157 = vmatprep.mubr.f32.mxu0 0.0
    %158 = vmatmul.mubr.f32.gmra.mxu0 %v62
    %v159 = vpop.f32.mrf.mxu0
    %v160 = vadd.f32 %v47, %v159
    %v161 = vpop.f32.mrf.mxu0
    %162 = vmatprep.mubr.f32.mxu0 0.0
    %163 = vmatmul.mubr.f32.gmra.mxu0 %v65
    %v164 = vpop.f32.mrf.mxu0
    %v165 = vadd.f32 %v47, %v164
    %v166 = vpop.f32.mrf.mxu0
    %167 = vmatprep.mubr.f32.mxu0 0.0
    %168 = vmatmul.mubr.f32.gmra.mxu0 %v68
    %v169 = vpop.f32.mrf.mxu0
    %v170 = vadd.f32 %v47, %v169
    %v171 = vpop.f32.mrf.mxu0
    %172 = vmatprep.mubr.f32.mxu0 0.0
    %173 = vmatmul.mubr.f32.gmra.mxu0 %v71
    %v174 = vpop.f32.mrf.mxu0
    %v175 = vadd.f32 %v47, %v174
    %v176 = vpop.f32.mrf.mxu0
    %177 = vdwg.mxu0
    %vm178 = vcmask 261120
    %v180 = vsel %vm178, 0.0, 0
    %182 = vmatprep.subr.mxu0 0.0
    %183 = vmatpush1.msra.mxu0 0.0
    %184 = vmatprep.subr.mxu0 0.0
    %185 = vmatpush1.msra.mxu0 0.0
    %186 = vmatprep.subr.mxu0 0.0
    %187 = vmatpush1.msra.mxu0 0.0
    %188 = vmatprep.subr.mxu0 0.0
    %189 = vmatpush1.msra.mxu0 0.0
    %190 = vmatprep.subr.mxu0 0.0
    %191 = vmatpush1.msra.mxu0 0.0
    %192 = vmatprep.subr.mxu0 0.0
    %193 = vmatpush1.msra.mxu0 0.0
    %194 = vmatprep.subr.mxu0 0.0
    %195 = vmatpush1.msra.mxu0 0.0
    %196 = vmatprep.subr.mxu0 0.0
    %197 = vmatpush1.msra.mxu0 0.0
    %198 = vmatprep.subr.mxu0 0.0
    %199 = vmatpush1.msra.mxu0 0.0
    %200 = vmatprep.subr.mxu0 0.0
    %201 = vmatpush1.msra.mxu0 0.0
    %202 = vmatprep.subr.mxu0 0.0
    %203 = vmatpush1.msra.mxu0 0.0
    %204 = vmatprep.subr.mxu0 0.0
    %205 = vmatpush1.msra.mxu0 0.0
    %206 = vmatprep.subr.mxu0 0.0
    %207 = vmatpush1.msra.mxu0 %v34
    %208 = vmatprep.subr.mxu0 0.0
    %209 = vmatpush1.msra.mxu0 %v33
    %210 = vmatprep.subr.mxu0 0.0
    %211 = vmatpush1.msra.mxu0 %v32
    %212 = vmatprep.subr.mxu0 0.0
    %213 = vmatpush1.msra.mxu0 %v31
    %214 = vmatprep.subr.mxu0 0.0
    %215 = vmatpush2.msra.mxu0 0.0
    %216 = vmatprep.subr.mxu0 0.0
    %217 = vmatpush2.msra.mxu0 0.0
    %218 = vmatprep.subr.mxu0 0.0
    %219 = vmatpush2.msra.mxu0 0.0
    %220 = vmatprep.subr.mxu0 0.0
    %221 = vmatpush2.msra.mxu0 0.0
    %222 = vmatprep.subr.mxu0 0.0
    %223 = vmatpush2.msra.mxu0 0.0
    %224 = vmatprep.subr.mxu0 0.0
    %225 = vmatpush2.msra.mxu0 0.0
    %226 = vmatprep.subr.mxu0 0.0
    %227 = vmatpush2.msra.mxu0 0.0
    %228 = vmatprep.subr.mxu0 0.0
    %229 = vmatpush2.msra.mxu0 0.0
    %230 = vmatprep.subr.mxu0 0.0
    %231 = vmatpush2.msra.mxu0 0.0
    %232 = vmatprep.subr.mxu0 0.0
    %233 = vmatpush2.msra.mxu0 0.0
    %234 = vmatprep.subr.mxu0 0.0
    %235 = vmatpush2.msra.mxu0 0.0
    %236 = vmatprep.subr.mxu0 0.0
    %237 = vmatpush2.msra.mxu0 0.0
    %238 = vmatprep.subr.mxu0 0.0
    %239 = vmatpush2.msra.mxu0 0.0
    %240 = vmatprep.subr.mxu0 0.0
    %241 = vmatpush2.msra.mxu0 0.0
    %242 = vmatprep.subr.mxu0 0.0
    %243 = vmatpush2.msra.mxu0 0.0
    %244 = vmatprep.subr.mxu0 0.0
    %245 = vmatpush2.msra.mxu0 0.0
    %246 = vmatprep.mubr.f32.mxu0 0.0
    %247 = vmatmul.mubr.f32.gmra.mxu0 %v180
    %v248 = vpop.f32.mrf.mxu0
    %v249 = vadd.f32 0.0, %v248
    %v250 = vpop.f32.mrf.mxu0
    %251 = vdwg.mxu0
    %v252 = vadd.f32 %v140, %v249
    %v253 = vxor.u32 %v252, 2147483648
    %v254 = vmul.f32 %v253, 1.442695
    %v255 = vpow.pop %v254
    %v256 = vadd.f32 %v255, 1.0
    %v257 = vrcp.pop %v256
    %v258 = vmul.f32 1.0, %v257
    %v259 = vmul.f32 %v258, 2.0
    %v260 = vsub.f32 %v259, 1.0
    %v261 = vmul.f32 %v258, 0.0
    %263 = vrot.lane.b32.xlu0 %v260, 64
    %v264 = vpop.permute.xlu0 %263
    %v266 = vmul.f32 %v258, %v264
    %268 = vrot.lane.b32.xlu0 %v266, 32
    %v269 = vpop.permute.xlu0 %268
    %v271 = vadd.f32 %v261, %v269
    %v272 = vtanh.pop %v271
    %274 = vrot.lane.b32.xlu0 %v272, 64
    %v275 = vpop.permute.xlu0 %274
    %v277 = vmul.f32 %v258, %v275
    %279 = vrot.lane.b32.xlu0 %v277, 32
    %v280 = vpop.permute.xlu0 %279
    %v281 = vsel %vm178, %v280, 0
    %283 = vmatprep.subr.mxu0 0.0
    %284 = vmatpush1.msra.mxu0 0.0
    %285 = vmatprep.subr.mxu0 0.0
    %286 = vmatpush1.msra.mxu0 0.0
    %287 = vmatprep.subr.mxu0 0.0
    %288 = vmatpush1.msra.mxu0 0.0
    %289 = vmatprep.subr.mxu0 0.0
    %290 = vmatpush1.msra.mxu0 0.0
    %291 = vmatprep.subr.mxu0 0.0
    %292 = vmatpush1.msra.mxu0 0.0
    %293 = vmatprep.subr.mxu0 0.0
    %294 = vmatpush1.msra.mxu0 0.0
    %295 = vmatprep.subr.mxu0 0.0
    %296 = vmatpush1.msra.mxu0 0.0
    %297 = vmatprep.subr.mxu0 0.0
    %298 = vmatpush1.msra.mxu0 0.0
    %299 = vmatprep.subr.mxu0 0.0
    %300 = vmatpush1.msra.mxu0 0.0
    %301 = vmatprep.subr.mxu0 0.0
    %302 = vmatpush1.msra.mxu0 0.0
    %303 = vmatprep.subr.mxu0 0.0
    %304 = vmatpush1.msra.mxu0 0.0
    %305 = vmatprep.subr.mxu0 0.0
    %306 = vmatpush1.msra.mxu0 0.0
    %307 = vmatprep.subr.mxu0 0.0
    %308 = vmatpush1.msra.mxu0 %v34
    %309 = vmatprep.subr.mxu0 0.0
    %310 = vmatpush1.msra.mxu0 %v33
    %311 = vmatprep.subr.mxu0 0.0
    %312 = vmatpush1.msra.mxu0 %v32
    %313 = vmatprep.subr.mxu0 0.0
    %314 = vmatpush1.msra.mxu0 %v31
    %315 = vmatprep.subr.mxu0 0.0
    %316 = vmatpush2.msra.mxu0 0.0
    %317 = vmatprep.subr.mxu0 0.0
    %318 = vmatpush2.msra.mxu0 0.0
    %319 = vmatprep.subr.mxu0 0.0
    %320 = vmatpush2.msra.mxu0 0.0
    %321 = vmatprep.subr.mxu0 0.0
    %322 = vmatpush2.msra.mxu0 0.0
    %323 = vmatprep.subr.mxu0 0.0
    %324 = vmatpush2.msra.mxu0 0.0
    %325 = vmatprep.subr.mxu0 0.0
    %326 = vmatpush2.msra.mxu0 0.0
    %327 = vmatprep.subr.mxu0 0.0
    %328 = vmatpush2.msra.mxu0 0.0
    %329 = vmatprep.subr.mxu0 0.0
    %330 = vmatpush2.msra.mxu0 0.0
    %331 = vmatprep.subr.mxu0 0.0
    %332 = vmatpush2.msra.mxu0 0.0
    %333 = vmatprep.subr.mxu0 0.0
    %334 = vmatpush2.msra.mxu0 0.0
    %335 = vmatprep.subr.mxu0 0.0
    %336 = vmatpush2.msra.mxu0 0.0
    %337 = vmatprep.subr.mxu0 0.0
    %338 = vmatpush2.msra.mxu0 0.0
    %339 = vmatprep.subr.mxu0 0.0
    %340 = vmatpush2.msra.mxu0 0.0
    %341 = vmatprep.subr.mxu0 0.0
    %342 = vmatpush2.msra.mxu0 0.0
    %343 = vmatprep.subr.mxu0 0.0
    %344 = vmatpush2.msra.mxu0 0.0
    %345 = vmatprep.subr.mxu0 0.0
    %346 = vmatpush2.msra.mxu0 0.0
    %347 = vmatprep.mubr.f32.mxu0 0.0
    %348 = vmatmul.mubr.f32.gmra.mxu0 %v281
    %v349 = vpop.f32.mrf.mxu0
    %v350 = vadd.f32 0.0, %v349
    %v351 = vpop.f32.mrf.mxu0
    %352 = vdwg.mxu0
    %v353 = vadd.f32 %v145, %v350
    %v354 = vxor.u32 %v353, 2147483648
    %v355 = vmul.f32 %v354, 1.442695
    %v356 = vpow.pop %v355
    %v357 = vadd.f32 %v356, 1.0
    %v358 = vrcp.pop %v357
    %v359 = vmul.f32 1.0, %v358
    %v360 = vmul.f32 %v359, 2.0
    %v361 = vsub.f32 %v360, 1.0
    %v362 = vmul.f32 %v359, %v271
    %364 = vrot.lane.b32.xlu0 %v361, 64
    %v365 = vpop.permute.xlu0 %364
    %v367 = vmul.f32 %v359, %v365
    %369 = vrot.lane.b32.xlu0 %v367, 32
    %v370 = vpop.permute.xlu0 %369
    %v372 = vadd.f32 %v362, %v370
    %v373 = vtanh.pop %v372
    %375 = vrot.lane.b32.xlu0 %v373, 64
    %v376 = vpop.permute.xlu0 %375
    %v378 = vmul.f32 %v359, %v376
    %380 = vrot.lane.b32.xlu0 %v378, 32
    %v381 = vpop.permute.xlu0 %380
    %v382 = vsel %vm178, %v381, 0
    %384 = vmatprep.subr.mxu0 0.0
    %385 = vmatpush1.msra.mxu0 0.0
    %386 = vmatprep.subr.mxu0 0.0
    %387 = vmatpush1.msra.mxu0 0.0
    %388 = vmatprep.subr.mxu0 0.0
    %389 = vmatpush1.msra.mxu0 0.0
    %390 = vmatprep.subr.mxu0 0.0
    %391 = vmatpush1.msra.mxu0 0.0
    %392 = vmatprep.subr.mxu0 0.0
    %393 = vmatpush1.msra.mxu0 0.0
    %394 = vmatprep.subr.mxu0 0.0
    %395 = vmatpush1.msra.mxu0 0.0
    %396 = vmatprep.subr.mxu0 0.0
    %397 = vmatpush1.msra.mxu0 0.0
    %398 = vmatprep.subr.mxu0 0.0
    %399 = vmatpush1.msra.mxu0 0.0
    %400 = vmatprep.subr.mxu0 0.0
    %401 = vmatpush1.msra.mxu0 0.0
    %402 = vmatprep.subr.mxu0 0.0
    %403 = vmatpush1.msra.mxu0 0.0
    %404 = vmatprep.subr.mxu0 0.0
    %405 = vmatpush1.msra.mxu0 0.0
    %406 = vmatprep.subr.mxu0 0.0
    %407 = vmatpush1.msra.mxu0 0.0
    %408 = vmatprep.subr.mxu0 0.0
    %409 = vmatpush1.msra.mxu0 %v34
    %410 = vmatprep.subr.mxu0 0.0
    %411 = vmatpush1.msra.mxu0 %v33
    %412 = vmatprep.subr.mxu0 0.0
    %413 = vmatpush1.msra.mxu0 %v32
    %414 = vmatprep.subr.mxu0 0.0
    %415 = vmatpush1.msra.mxu0 %v31
    %416 = vmatprep.subr.mxu0 0.0
    %417 = vmatpush2.msra.mxu0 0.0
    %418 = vmatprep.subr.mxu0 0.0
    %419 = vmatpush2.msra.mxu0 0.0
    %420 = vmatprep.subr.mxu0 0.0
    %421 = vmatpush2.msra.mxu0 0.0
    %422 = vmatprep.subr.mxu0 0.0
    %423 = vmatpush2.msra.mxu0 0.0
    %424 = vmatprep.subr.mxu0 0.0
    %425 = vmatpush2.msra.mxu0 0.0
    %426 = vmatprep.subr.mxu0 0.0
    %427 = vmatpush2.msra.mxu0 0.0
    %428 = vmatprep.subr.mxu0 0.0
    %429 = vmatpush2.msra.mxu0 0.0
    %430 = vmatprep.subr.mxu0 0.0
    %431 = vmatpush2.msra.mxu0 0.0
    %432 = vmatprep.subr.mxu0 0.0
    %433 = vmatpush2.msra.mxu0 0.0
    %434 = vmatprep.subr.mxu0 0.0
    %435 = vmatpush2.msra.mxu0 0.0
    %436 = vmatprep.subr.mxu0 0.0
    %437 = vmatpush2.msra.mxu0 0.0
    %438 = vmatprep.subr.mxu0 0.0
    %439 = vmatpush2.msra.mxu0 0.0
    %440 = vmatprep.subr.mxu0 0.0
    %441 = vmatpush2.msra.mxu0 0.0
    %442 = vmatprep.subr.mxu0 0.0
    %443 = vmatpush2.msra.mxu0 0.0
    %444 = vmatprep.subr.mxu0 0.0
    %445 = vmatpush2.msra.mxu0 0.0
    %446 = vmatprep.subr.mxu0 0.0
    %447 = vmatpush2.msra.mxu0 0.0
    %448 = vmatprep.mubr.f32.mxu0 0.0
    %449 = vmatmul.mubr.f32.gmra.mxu0 %v382
    %v450 = vpop.f32.mrf.mxu0
    %v451 = vadd.f32 0.0, %v450
    %v452 = vpop.f32.mrf.mxu0
    %453 = vdwg.mxu0
    %v454 = vadd.f32 %v150, %v451
    %v455 = vxor.u32 %v454, 2147483648
    %v456 = vmul.f32 %v455, 1.442695
    %v457 = vpow.pop %v456
    %v458 = vadd.f32 %v457, 1.0
    %v459 = vrcp.pop %v458
    %v460 = vmul.f32 1.0, %v459
    %v461 = vmul.f32 %v460, 2.0
    %v462 = vsub.f32 %v461, 1.0
    %v463 = vmul.f32 %v460, %v372
    %465 = vrot.lane.b32.xlu0 %v462, 64
    %v466 = vpop.permute.xlu0 %465
    %v468 = vmul.f32 %v460, %v466
    %470 = vrot.lane.b32.xlu0 %v468, 32
    %v471 = vpop.permute.xlu0 %470
    %v473 = vadd.f32 %v463, %v471
    %v474 = vtanh.pop %v473
    %476 = vrot.lane.b32.xlu0 %v474, 64
    %v477 = vpop.permute.xlu0 %476
    %v479 = vmul.f32 %v460, %v477
    %481 = vrot.lane.b32.xlu0 %v479, 32
    %v482 = vpop.permute.xlu0 %481
    %v483 = vsel %vm178, %v482, 0
    %485 = vmatprep.subr.mxu0 0.0
    %486 = vmatpush1.msra.mxu0 0.0
    %487 = vmatprep.subr.mxu0 0.0
    %488 = vmatpush1.msra.mxu0 0.0
    %489 = vmatprep.subr.mxu0 0.0
    %490 = vmatpush1.msra.mxu0 0.0
    %491 = vmatprep.subr.mxu0 0.0
    %492 = vmatpush1.msra.mxu0 0.0
    %493 = vmatprep.subr.mxu0 0.0
    %494 = vmatpush1.msra.mxu0 0.0
    %495 = vmatprep.subr.mxu0 0.0
    %496 = vmatpush1.msra.mxu0 0.0
    %497 = vmatprep.subr.mxu0 0.0
    %498 = vmatpush1.msra.mxu0 0.0
    %499 = vmatprep.subr.mxu0 0.0
    %500 = vmatpush1.msra.mxu0 0.0
    %501 = vmatprep.subr.mxu0 0.0
    %502 = vmatpush1.msra.mxu0 0.0
    %503 = vmatprep.subr.mxu0 0.0
    %504 = vmatpush1.msra.mxu0 0.0
    %505 = vmatprep.subr.mxu0 0.0
    %506 = vmatpush1.msra.mxu0 0.0
    %507 = vmatprep.subr.mxu0 0.0
    %508 = vmatpush1.msra.mxu0 0.0
    %509 = vmatprep.subr.mxu0 0.0
    %510 = vmatpush1.msra.mxu0 %v34
    %511 = vmatprep.subr.mxu0 0.0
    %512 = vmatpush1.msra.mxu0 %v33
    %513 = vmatprep.subr.mxu0 0.0
    %514 = vmatpush1.msra.mxu0 %v32
    %515 = vmatprep.subr.mxu0 0.0
    %516 = vmatpush1.msra.mxu0 %v31
    %517 = vmatprep.subr.mxu0 0.0
    %518 = vmatpush2.msra.mxu0 0.0
    %519 = vmatprep.subr.mxu0 0.0
    %520 = vmatpush2.msra.mxu0 0.0
    %521 = vmatprep.subr.mxu0 0.0
    %522 = vmatpush2.msra.mxu0 0.0
    %523 = vmatprep.subr.mxu0 0.0
    %524 = vmatpush2.msra.mxu0 0.0
    %525 = vmatprep.subr.mxu0 0.0
    %526 = vmatpush2.msra.mxu0 0.0
    %527 = vmatprep.subr.mxu0 0.0
    %528 = vmatpush2.msra.mxu0 0.0
    %529 = vmatprep.subr.mxu0 0.0
    %530 = vmatpush2.msra.mxu0 0.0
    %531 = vmatprep.subr.mxu0 0.0
    %532 = vmatpush2.msra.mxu0 0.0
    %533 = vmatprep.subr.mxu0 0.0
    %534 = vmatpush2.msra.mxu0 0.0
    %535 = vmatprep.subr.mxu0 0.0
    %536 = vmatpush2.msra.mxu0 0.0
    %537 = vmatprep.subr.mxu0 0.0
    %538 = vmatpush2.msra.mxu0 0.0
    %539 = vmatprep.subr.mxu0 0.0
    %540 = vmatpush2.msra.mxu0 0.0
    %541 = vmatprep.subr.mxu0 0.0
    %542 = vmatpush2.msra.mxu0 0.0
    %543 = vmatprep.subr.mxu0 0.0
    %544 = vmatpush2.msra.mxu0 0.0
    %545 = vmatprep.subr.mxu0 0.0
    %546 = vmatpush2.msra.mxu0 0.0
    %547 = vmatprep.subr.mxu0 0.0
    %548 = vmatpush2.msra.mxu0 0.0
    %549 = vmatprep.mubr.f32.mxu0 0.0
    %550 = vmatmul.mubr.f32.gmra.mxu0 %v483
    %v551 = vpop.f32.mrf.mxu0
    %v552 = vadd.f32 0.0, %v551
    %v553 = vpop.f32.mrf.mxu0
    %554 = vdwg.mxu0
    %v555 = vadd.f32 %v155, %v552
    %v556 = vxor.u32 %v555, 2147483648
    %v557 = vmul.f32 %v556, 1.442695
    %v558 = vpow.pop %v557
    %v559 = vadd.f32 %v558, 1.0
    %v560 = vrcp.pop %v559
    %v561 = vmul.f32 1.0, %v560
    %v562 = vmul.f32 %v561, 2.0
    %v563 = vsub.f32 %v562, 1.0
    %v564 = vmul.f32 %v561, %v473
    %566 = vrot.lane.b32.xlu0 %v563, 64
    %v567 = vpop.permute.xlu0 %566
    %v569 = vmul.f32 %v561, %v567
    %571 = vrot.lane.b32.xlu0 %v569, 32
    %v572 = vpop.permute.xlu0 %571
    %v574 = vadd.f32 %v564, %v572
    %v575 = vtanh.pop %v574
    %577 = vrot.lane.b32.xlu0 %v575, 64
    %v578 = vpop.permute.xlu0 %577
    %v580 = vmul.f32 %v561, %v578
    %582 = vrot.lane.b32.xlu0 %v580, 32
    %v583 = vpop.permute.xlu0 %582
    %v584 = vsel %vm178, %v583, 0
    %586 = vmatprep.subr.mxu0 0.0
    %587 = vmatpush1.msra.mxu0 0.0
    %588 = vmatprep.subr.mxu0 0.0
    %589 = vmatpush1.msra.mxu0 0.0
    %590 = vmatprep.subr.mxu0 0.0
    %591 = vmatpush1.msra.mxu0 0.0
    %592 = vmatprep.subr.mxu0 0.0
    %593 = vmatpush1.msra.mxu0 0.0
    %594 = vmatprep.subr.mxu0 0.0
    %595 = vmatpush1.msra.mxu0 0.0
    %596 = vmatprep.subr.mxu0 0.0
    %597 = vmatpush1.msra.mxu0 0.0
    %598 = vmatprep.subr.mxu0 0.0
    %599 = vmatpush1.msra.mxu0 0.0
    %600 = vmatprep.subr.mxu0 0.0
    %601 = vmatpush1.msra.mxu0 0.0
    %602 = vmatprep.subr.mxu0 0.0
    %603 = vmatpush1.msra.mxu0 0.0
    %604 = vmatprep.subr.mxu0 0.0
    %605 = vmatpush1.msra.mxu0 0.0
    %606 = vmatprep.subr.mxu0 0.0
    %607 = vmatpush1.msra.mxu0 0.0
    %608 = vmatprep.subr.mxu0 0.0
    %609 = vmatpush1.msra.mxu0 0.0
    %610 = vmatprep.subr.mxu0 0.0
    %611 = vmatpush1.msra.mxu0 %v34
    %612 = vmatprep.subr.mxu0 0.0
    %613 = vmatpush1.msra.mxu0 %v33
    %614 = vmatprep.subr.mxu0 0.0
    %615 = vmatpush1.msra.mxu0 %v32
    %616 = vmatprep.subr.mxu0 0.0
    %617 = vmatpush1.msra.mxu0 %v31
    %618 = vmatprep.subr.mxu0 0.0
    %619 = vmatpush2.msra.mxu0 0.0
    %620 = vmatprep.subr.mxu0 0.0
    %621 = vmatpush2.msra.mxu0 0.0
    %622 = vmatprep.subr.mxu0 0.0
    %623 = vmatpush2.msra.mxu0 0.0
    %624 = vmatprep.subr.mxu0 0.0
    %625 = vmatpush2.msra.mxu0 0.0
    %626 = vmatprep.subr.mxu0 0.0
    %627 = vmatpush2.msra.mxu0 0.0
    %628 = vmatprep.subr.mxu0 0.0
    %629 = vmatpush2.msra.mxu0 0.0
    %630 = vmatprep.subr.mxu0 0.0
    %631 = vmatpush2.msra.mxu0 0.0
    %632 = vmatprep.subr.mxu0 0.0
    %633 = vmatpush2.msra.mxu0 0.0
    %634 = vmatprep.subr.mxu0 0.0
    %635 = vmatpush2.msra.mxu0 0.0
    %636 = vmatprep.subr.mxu0 0.0
    %637 = vmatpush2.msra.mxu0 0.0
    %638 = vmatprep.subr.mxu0 0.0
    %639 = vmatpush2.msra.mxu0 0.0
    %640 = vmatprep.subr.mxu0 0.0
    %641 = vmatpush2.msra.mxu0 0.0
    %642 = vmatprep.subr.mxu0 0.0
    %643 = vmatpush2.msra.mxu0 0.0
    %644 = vmatprep.subr.mxu0 0.0
    %645 = vmatpush2.msra.mxu0 0.0
    %646 = vmatprep.subr.mxu0 0.0
    %647 = vmatpush2.msra.mxu0 0.0
    %648 = vmatprep.subr.mxu0 0.0
    %649 = vmatpush2.msra.mxu0 0.0
    %650 = vmatprep.mubr.f32.mxu0 0.0
    %651 = vmatmul.mubr.f32.gmra.mxu0 %v584
    %v652 = vpop.f32.mrf.mxu0
    %v653 = vadd.f32 0.0, %v652
    %v654 = vpop.f32.mrf.mxu0
    %655 = vdwg.mxu0
    %v656 = vadd.f32 %v160, %v653
    %v657 = vxor.u32 %v656, 2147483648
    %v658 = vmul.f32 %v657, 1.442695
    %v659 = vpow.pop %v658
    %v660 = vadd.f32 %v659, 1.0
    %v661 = vrcp.pop %v660
    %v662 = vmul.f32 1.0, %v661
    %v663 = vmul.f32 %v662, 2.0
    %v664 = vsub.f32 %v663, 1.0
    %v665 = vmul.f32 %v662, %v574
    %667 = vrot.lane.b32.xlu0 %v664, 64
    %v668 = vpop.permute.xlu0 %667
    %v670 = vmul.f32 %v662, %v668
    %672 = vrot.lane.b32.xlu0 %v670, 32
    %v673 = vpop.permute.xlu0 %672
    %v675 = vadd.f32 %v665, %v673
    %v676 = vtanh.pop %v675
    %678 = vrot.lane.b32.xlu0 %v676, 64
    %v679 = vpop.permute.xlu0 %678
    %v681 = vmul.f32 %v662, %v679
    %683 = vrot.lane.b32.xlu0 %v681, 32
    %v684 = vpop.permute.xlu0 %683
    %v685 = vsel %vm178, %v684, 0
    %687 = vmatprep.subr.mxu0 0.0
    %688 = vmatpush1.msra.mxu0 0.0
    %689 = vmatprep.subr.mxu0 0.0
    %690 = vmatpush1.msra.mxu0 0.0
    %691 = vmatprep.subr.mxu0 0.0
    %692 = vmatpush1.msra.mxu0 0.0
    %693 = vmatprep.subr.mxu0 0.0
    %694 = vmatpush1.msra.mxu0 0.0
    %695 = vmatprep.subr.mxu0 0.0
    %696 = vmatpush1.msra.mxu0 0.0
    %697 = vmatprep.subr.mxu0 0.0
    %698 = vmatpush1.msra.mxu0 0.0
    %699 = vmatprep.subr.mxu0 0.0
    %700 = vmatpush1.msra.mxu0 0.0
    %701 = vmatprep.subr.mxu0 0.0
    %702 = vmatpush1.msra.mxu0 0.0
    %703 = vmatprep.subr.mxu0 0.0
    %704 = vmatpush1.msra.mxu0 0.0
    %705 = vmatprep.subr.mxu0 0.0
    %706 = vmatpush1.msra.mxu0 0.0
    %707 = vmatprep.subr.mxu0 0.0
    %708 = vmatpush1.msra.mxu0 0.0
    %709 = vmatprep.subr.mxu0 0.0
    %710 = vmatpush1.msra.mxu0 0.0
    %711 = vmatprep.subr.mxu0 0.0
    %712 = vmatpush1.msra.mxu0 %v34
    %713 = vmatprep.subr.mxu0 0.0
    %714 = vmatpush1.msra.mxu0 %v33
    %715 = vmatprep.subr.mxu0 0.0
    %716 = vmatpush1.msra.mxu0 %v32
    %717 = vmatprep.subr.mxu0 0.0
    %718 = vmatpush1.msra.mxu0 %v31
    %719 = vmatprep.subr.mxu0 0.0
    %720 = vmatpush2.msra.mxu0 0.0
    %721 = vmatprep.subr.mxu0 0.0
    %722 = vmatpush2.msra.mxu0 0.0
    %723 = vmatprep.subr.mxu0 0.0
    %724 = vmatpush2.msra.mxu0 0.0
    %725 = vmatprep.subr.mxu0 0.0
    %726 = vmatpush2.msra.mxu0 0.0
    %727 = vmatprep.subr.mxu0 0.0
    %728 = vmatpush2.msra.mxu0 0.0
    %729 = vmatprep.subr.mxu0 0.0
    %730 = vmatpush2.msra.mxu0 0.0
    %731 = vmatprep.subr.mxu0 0.0
    %732 = vmatpush2.msra.mxu0 0.0
    %733 = vmatprep.subr.mxu0 0.0
    %734 = vmatpush2.msra.mxu0 0.0
    %735 = vmatprep.subr.mxu0 0.0
    %736 = vmatpush2.msra.mxu0 0.0
    %737 = vmatprep.subr.mxu0 0.0
    %738 = vmatpush2.msra.mxu0 0.0
    %739 = vmatprep.subr.mxu0 0.0
    %740 = vmatpush2.msra.mxu0 0.0
    %741 = vmatprep.subr.mxu0 0.0
    %742 = vmatpush2.msra.mxu0 0.0
    %743 = vmatprep.subr.mxu0 0.0
    %744 = vmatpush2.msra.mxu0 0.0
    %745 = vmatprep.subr.mxu0 0.0
    %746 = vmatpush2.msra.mxu0 0.0
    %747 = vmatprep.subr.mxu0 0.0
    %748 = vmatpush2.msra.mxu0 0.0
    %749 = vmatprep.subr.mxu0 0.0
    %750 = vmatpush2.msra.mxu0 0.0
    %751 = vmatprep.mubr.f32.mxu0 0.0
    %752 = vmatmul.mubr.f32.gmra.mxu0 %v685
    %v753 = vpop.f32.mrf.mxu0
    %v754 = vadd.f32 0.0, %v753
    %v755 = vpop.f32.mrf.mxu0
    %756 = vdwg.mxu0
    %v757 = vadd.f32 %v165, %v754
    %v758 = vxor.u32 %v757, 2147483648
    %v759 = vmul.f32 %v758, 1.442695
    %v760 = vpow.pop %v759
    %v761 = vadd.f32 %v760, 1.0
    %v762 = vrcp.pop %v761
    %v763 = vmul.f32 1.0, %v762
    %v764 = vmul.f32 %v763, 2.0
    %v765 = vsub.f32 %v764, 1.0
    %v766 = vmul.f32 %v763, %v675
    %768 = vrot.lane.b32.xlu0 %v765, 64
    %v769 = vpop.permute.xlu0 %768
    %v771 = vmul.f32 %v763, %v769
    %773 = vrot.lane.b32.xlu0 %v771, 32
    %v774 = vpop.permute.xlu0 %773
    %v776 = vadd.f32 %v766, %v774
    %v777 = vtanh.pop %v776
    %779 = vrot.lane.b32.xlu0 %v777, 64
    %v780 = vpop.permute.xlu0 %779
    %v782 = vmul.f32 %v763, %v780
    %784 = vrot.lane.b32.xlu0 %v782, 32
    %v785 = vpop.permute.xlu0 %784
    %v786 = vsel %vm178, %v785, 0
    %788 = vmatprep.subr.mxu0 0.0
    %789 = vmatpush1.msra.mxu0 0.0
    %790 = vmatprep.subr.mxu0 0.0
    %791 = vmatpush1.msra.mxu0 0.0
    %792 = vmatprep.subr.mxu0 0.0
    %793 = vmatpush1.msra.mxu0 0.0
    %794 = vmatprep.subr.mxu0 0.0
    %795 = vmatpush1.msra.mxu0 0.0
    %796 = vmatprep.subr.mxu0 0.0
    %797 = vmatpush1.msra.mxu0 0.0
    %798 = vmatprep.subr.mxu0 0.0
    %799 = vmatpush1.msra.mxu0 0.0
    %800 = vmatprep.subr.mxu0 0.0
    %801 = vmatpush1.msra.mxu0 0.0
    %802 = vmatprep.subr.mxu0 0.0
    %803 = vmatpush1.msra.mxu0 0.0
    %804 = vmatprep.subr.mxu0 0.0
    %805 = vmatpush1.msra.mxu0 0.0
    %806 = vmatprep.subr.mxu0 0.0
    %807 = vmatpush1.msra.mxu0 0.0
    %808 = vmatprep.subr.mxu0 0.0
    %809 = vmatpush1.msra.mxu0 0.0
    %810 = vmatprep.subr.mxu0 0.0
    %811 = vmatpush1.msra.mxu0 0.0
    %812 = vmatprep.subr.mxu0 0.0
    %813 = vmatpush1.msra.mxu0 %v34
    %814 = vmatprep.subr.mxu0 0.0
    %815 = vmatpush1.msra.mxu0 %v33
    %816 = vmatprep.subr.mxu0 0.0
    %817 = vmatpush1.msra.mxu0 %v32
    %818 = vmatprep.subr.mxu0 0.0
    %819 = vmatpush1.msra.mxu0 %v31
    %820 = vmatprep.subr.mxu0 0.0
    %821 = vmatpush2.msra.mxu0 0.0
    %822 = vmatprep.subr.mxu0 0.0
    %823 = vmatpush2.msra.mxu0 0.0
    %824 = vmatprep.subr.mxu0 0.0
    %825 = vmatpush2.msra.mxu0 0.0
    %826 = vmatprep.subr.mxu0 0.0
    %827 = vmatpush2.msra.mxu0 0.0
    %828 = vmatprep.subr.mxu0 0.0
    %829 = vmatpush2.msra.mxu0 0.0
    %830 = vmatprep.subr.mxu0 0.0
    %831 = vmatpush2.msra.mxu0 0.0
    %832 = vmatprep.subr.mxu0 0.0
    %833 = vmatpush2.msra.mxu0 0.0
    %834 = vmatprep.subr.mxu0 0.0
    %835 = vmatpush2.msra.mxu0 0.0
    %836 = vmatprep.subr.mxu0 0.0
    %837 = vmatpush2.msra.mxu0 0.0
    %838 = vmatprep.subr.mxu0 0.0
    %839 = vmatpush2.msra.mxu0 0.0
    %840 = vmatprep.subr.mxu0 0.0
    %841 = vmatpush2.msra.mxu0 0.0
    %842 = vmatprep.subr.mxu0 0.0
    %843 = vmatpush2.msra.mxu0 0.0
    %844 = vmatprep.subr.mxu0 0.0
    %845 = vmatpush2.msra.mxu0 0.0
    %846 = vmatprep.subr.mxu0 0.0
    %847 = vmatpush2.msra.mxu0 0.0
    %848 = vmatprep.subr.mxu0 0.0
    %849 = vmatpush2.msra.mxu0 0.0
    %850 = vmatprep.subr.mxu0 0.0
    %851 = vmatpush2.msra.mxu0 0.0
    %852 = vmatprep.mubr.f32.mxu0 0.0
    %853 = vmatmul.mubr.f32.gmra.mxu0 %v786
    %v854 = vpop.f32.mrf.mxu0
    %v855 = vadd.f32 0.0, %v854
    %v856 = vpop.f32.mrf.mxu0
    %857 = vdwg.mxu0
    %v858 = vadd.f32 %v170, %v855
    %v859 = vxor.u32 %v858, 2147483648
    %v860 = vmul.f32 %v859, 1.442695
    %v861 = vpow.pop %v860
    %v862 = vadd.f32 %v861, 1.0
    %v863 = vrcp.pop %v862
    %v864 = vmul.f32 1.0, %v863
    %v865 = vmul.f32 %v864, 2.0
    %v866 = vsub.f32 %v865, 1.0
    %v867 = vmul.f32 %v864, %v776
    %869 = vrot.lane.b32.xlu0 %v866, 64
    %v870 = vpop.permute.xlu0 %869
    %v872 = vmul.f32 %v864, %v870
    %874 = vrot.lane.b32.xlu0 %v872, 32
    %v875 = vpop.permute.xlu0 %874
    %v877 = vadd.f32 %v867, %v875
    %v878 = vtanh.pop %v877
    %880 = vrot.lane.b32.xlu0 %v878, 64
    %v881 = vpop.permute.xlu0 %880
    %v883 = vmul.f32 %v864, %v881
    %885 = vrot.lane.b32.xlu0 %v883, 32
    %v886 = vpop.permute.xlu0 %885
    %v887 = vsel %vm178, %v886, 0
    %889 = vmatprep.subr.mxu0 0.0
    %890 = vmatpush1.msra.mxu0 0.0
    %891 = vmatprep.subr.mxu0 0.0
    %892 = vmatpush1.msra.mxu0 0.0
    %893 = vmatprep.subr.mxu0 0.0
    %894 = vmatpush1.msra.mxu0 0.0
    %895 = vmatprep.subr.mxu0 0.0
    %896 = vmatpush1.msra.mxu0 0.0
    %897 = vmatprep.subr.mxu0 0.0
    %898 = vmatpush1.msra.mxu0 0.0
    %899 = vmatprep.subr.mxu0 0.0
    %900 = vmatpush1.msra.mxu0 0.0
    %901 = vmatprep.subr.mxu0 0.0
    %902 = vmatpush1.msra.mxu0 0.0
    %903 = vmatprep.subr.mxu0 0.0
    %904 = vmatpush1.msra.mxu0 0.0
    %905 = vmatprep.subr.mxu0 0.0
    %906 = vmatpush1.msra.mxu0 0.0
    %907 = vmatprep.subr.mxu0 0.0
    %908 = vmatpush1.msra.mxu0 0.0
    %909 = vmatprep.subr.mxu0 0.0
    %910 = vmatpush1.msra.mxu0 0.0
    %911 = vmatprep.subr.mxu0 0.0
    %912 = vmatpush1.msra.mxu0 0.0
    %913 = vmatprep.subr.mxu0 0.0
    %914 = vmatpush1.msra.mxu0 %v34
    %915 = vmatprep.subr.mxu0 0.0
    %916 = vmatpush1.msra.mxu0 %v33
    %917 = vmatprep.subr.mxu0 0.0
    %918 = vmatpush1.msra.mxu0 %v32
    %919 = vmatprep.subr.mxu0 0.0
    %920 = vmatpush1.msra.mxu0 %v31
    %921 = vmatprep.subr.mxu0 0.0
    %922 = vmatpush2.msra.mxu0 0.0
    %923 = vmatprep.subr.mxu0 0.0
    %924 = vmatpush2.msra.mxu0 0.0
    %925 = vmatprep.subr.mxu0 0.0
    %926 = vmatpush2.msra.mxu0 0.0
    %927 = vmatprep.subr.mxu0 0.0
    %928 = vmatpush2.msra.mxu0 0.0
    %929 = vmatprep.subr.mxu0 0.0
    %930 = vmatpush2.msra.mxu0 0.0
    %931 = vmatprep.subr.mxu0 0.0
    %932 = vmatpush2.msra.mxu0 0.0
    %933 = vmatprep.subr.mxu0 0.0
    %934 = vmatpush2.msra.mxu0 0.0
    %935 = vmatprep.subr.mxu0 0.0
    %936 = vmatpush2.msra.mxu0 0.0
    %937 = vmatprep.subr.mxu0 0.0
    %938 = vmatpush2.msra.mxu0 0.0
    %939 = vmatprep.subr.mxu0 0.0
    %940 = vmatpush2.msra.mxu0 0.0
    %941 = vmatprep.subr.mxu0 0.0
    %942 = vmatpush2.msra.mxu0 0.0
    %943 = vmatprep.subr.mxu0 0.0
    %944 = vmatpush2.msra.mxu0 0.0
    %945 = vmatprep.subr.mxu0 0.0
    %946 = vmatpush2.msra.mxu0 0.0
    %947 = vmatprep.subr.mxu0 0.0
    %948 = vmatpush2.msra.mxu0 0.0
    %949 = vmatprep.subr.mxu0 0.0
    %950 = vmatpush2.msra.mxu0 0.0
    %951 = vmatprep.subr.mxu0 0.0
    %952 = vmatpush2.msra.mxu0 0.0
    %953 = vmatprep.mubr.f32.mxu0 0.0
    %954 = vmatmul.mubr.f32.gmra.mxu0 %v887
    %v955 = vpop.f32.mrf.mxu0
    %v956 = vadd.f32 0.0, %v955
    %v957 = vpop.f32.mrf.mxu0
    %958 = vdwg.mxu0
    %v959 = vadd.f32 %v175, %v956
    %v960 = vxor.u32 %v959, 2147483648
    %v961 = vmul.f32 %v960, 1.442695
    %v962 = vpow.pop %v961
    %v963 = vadd.f32 %v962, 1.0
    %v964 = vrcp.pop %v963
    %v965 = vmul.f32 1.0, %v964
    %v966 = vmul.f32 %v965, 2.0
    %v967 = vsub.f32 %v966, 1.0
    %v968 = vmul.f32 %v965, %v877
    %970 = vrot.lane.b32.xlu0 %v967, 64
    %v971 = vpop.permute.xlu0 %970
    %v973 = vmul.f32 %v965, %v971
    %975 = vrot.lane.b32.xlu0 %v973, 32
    %v976 = vpop.permute.xlu0 %975
    %v978 = vadd.f32 %v968, %v976
    %v979 = vtanh.pop %v978
    %981 = vrot.lane.b32.xlu0 %v979, 64
    %v982 = vpop.permute.xlu0 %981
    %v984 = vmul.f32 %v965, %v982
    %v985 = vld [vmem:[%s2] sm:$0xff]
    %v986 = vld [vmem:[%s2 + $0x8] sm:$0xff]
    %v987 = vld [vmem:[%s2 + $0x10] sm:$0xff]
    %v988 = vld [vmem:[%s2 + $0x18] sm:$0xff]
    %v989 = vld [vmem:[%s2 + $0x20] sm:$0xff]
    %v990 = vld [vmem:[%s2 + $0x28] sm:$0xff]
    %v991 = vld [vmem:[%s2 + $0x30] sm:$0xff]
    %v992 = vld [vmem:[%s2 + $0x38] sm:$0xff]
    %v993 = vld [vmem:[%s2 + $0x40] sm:$0xff]
    %v994 = vld [vmem:[%s2 + $0x48] sm:$0xff]
    %v995 = vld [vmem:[%s2 + $0x50] sm:$0xff]
    %v996 = vld [vmem:[%s2 + $0x58] sm:$0xff]
    %v997 = vld [vmem:[%s2 + $0x60] sm:$0xff]
    %v998 = vld [vmem:[%s2 + $0x68] sm:$0xff]
    %v999 = vld [vmem:[%s2 + $0x70] sm:$0xff]
    %v1000 = vld [vmem:[%s2 + $0x78] sm:$0xff]
    %v1001 = vld [vmem:[%s2 + $0x80] sm:$0xff]
    %v1002 = vld [vmem:[%s2 + $0x88] sm:$0xff]
    %v1003 = vld [vmem:[%s2 + $0x90] sm:$0xff]
    %v1004 = vld [vmem:[%s2 + $0x98] sm:$0xff]
    %v1005 = vld [vmem:[#allocation2 + $0x1] sm:$0x1]
    %v1006 = vlaneseq
    %v1007 = vshrl.u32 %v1006, 7
    %v1008 = vsub.s32 0, %v1007
    %v1009 = vrot.slane %v1005, %v1008
    %1011 = vrot.lane.b32.xlu0 %v984, 32
    %v1012 = vpop.permute.xlu0 %1011
    %v1013 = vsel %vm178, %v1012, 0
    %1015 = vmatprep.subr.mxu0 0.0
    %1016 = vmatpush1.msra.mxu0 0.0
    %1017 = vmatprep.subr.mxu0 0.0
    %1018 = vmatpush1.msra.mxu0 0.0
    %1019 = vmatprep.subr.mxu0 0.0
    %1020 = vmatpush1.msra.mxu0 0.0
    %1021 = vmatprep.subr.mxu0 0.0
    %1022 = vmatpush1.msra.mxu0 0.0
    %1023 = vmatprep.subr.mxu0 0.0
    %1024 = vmatpush1.msra.mxu0 0.0
    %1025 = vmatprep.subr.mxu0 0.0
    %1026 = vmatpush1.msra.mxu0 0.0
    %1027 = vmatprep.subr.mxu0 0.0
    %1028 = vmatpush1.msra.mxu0 0.0
    %1029 = vmatprep.subr.mxu0 0.0
    %1030 = vmatpush1.msra.mxu0 0.0
    %1031 = vmatprep.subr.mxu0 0.0
    %1032 = vmatpush1.msra.mxu0 0.0
    %1033 = vmatprep.subr.mxu0 0.0
    %1034 = vmatpush1.msra.mxu0 0.0
    %1035 = vmatprep.subr.mxu0 0.0
    %1036 = vmatpush1.msra.mxu0 0.0
    %1037 = vmatprep.subr.mxu0 0.0
    %1038 = vmatpush1.msra.mxu0 0.0
    %1039 = vmatprep.subr.mxu0 0.0
    %1040 = vmatpush1.msra.mxu0 %v988
    %1041 = vmatprep.subr.mxu0 0.0
    %1042 = vmatpush1.msra.mxu0 %v987
    %1043 = vmatprep.subr.mxu0 0.0
    %1044 = vmatpush1.msra.mxu0 %v986
    %1045 = vmatprep.subr.mxu0 0.0
    %1046 = vmatpush1.msra.mxu0 %v985
    %1047 = vmatprep.subr.mxu0 0.0
    %1048 = vmatpush2.msra.mxu0 0.0
    %1049 = vmatprep.subr.mxu0 0.0
    %1050 = vmatpush2.msra.mxu0 0.0
    %1051 = vmatprep.subr.mxu0 0.0
    %1052 = vmatpush2.msra.mxu0 0.0
    %1053 = vmatprep.subr.mxu0 0.0
    %1054 = vmatpush2.msra.mxu0 0.0
    %1055 = vmatprep.subr.mxu0 0.0
    %1056 = vmatpush2.msra.mxu0 0.0
    %1057 = vmatprep.subr.mxu0 0.0
    %1058 = vmatpush2.msra.mxu0 0.0
    %1059 = vmatprep.subr.mxu0 0.0
    %1060 = vmatpush2.msra.mxu0 0.0
    %1061 = vmatprep.subr.mxu0 0.0
    %1062 = vmatpush2.msra.mxu0 0.0
    %1063 = vmatprep.subr.mxu0 0.0
    %1064 = vmatpush2.msra.mxu0 0.0
    %1065 = vmatprep.subr.mxu0 0.0
    %1066 = vmatpush2.msra.mxu0 0.0
    %1067 = vmatprep.subr.mxu0 0.0
    %1068 = vmatpush2.msra.mxu0 0.0
    %1069 = vmatprep.subr.mxu0 0.0
    %1070 = vmatpush2.msra.mxu0 0.0
    %1071 = vmatprep.subr.mxu0 0.0
    %1072 = vmatpush2.msra.mxu0 0.0
    %1073 = vmatprep.subr.mxu0 0.0
    %1074 = vmatpush2.msra.mxu0 0.0
    %1075 = vmatprep.subr.mxu0 0.0
    %1076 = vmatpush2.msra.mxu0 0.0
    %1077 = vmatprep.subr.mxu0 0.0
    %1078 = vmatpush2.msra.mxu0 0.0
    %1079 = vmatprep.mubr.f32.mxu0 0.0
    %1080 = vmatmul.mubr.f32.gmra.mxu0 %v1013
    %v1081 = vpop.f32.mrf.mxu0
    %v1082 = vadd.f32 %v1009, %v1081
    %v1083 = vpop.f32.mrf.mxu0
    %1084 = vdwg.mxu0
    %v1085 = vmax.f32 %v1082, 0.0
    %v1086 = vld [vmem:[#allocation2 + $0x2] sm:$0x1]
    %v1087 = vlaneseq
    %v1088 = vshrl.u32 %v1087, 7
    %v1089 = vsub.s32 0, %v1088
    %v1090 = vrot.slane %v1086, %v1089
    %1091 = vmatprep.subr.mxu0 0.0
    %1092 = vmatpush1.msra.mxu0 %v1004
    %1093 = vmatprep.subr.mxu0 0.0
    %1094 = vmatpush1.msra.mxu0 %v1003
    %1095 = vmatprep.subr.mxu0 0.0
    %1096 = vmatpush1.msra.mxu0 %v1002
    %1097 = vmatprep.subr.mxu0 0.0
    %1098 = vmatpush1.msra.mxu0 %v1001
    %1099 = vmatprep.subr.mxu0 0.0
    %1100 = vmatpush1.msra.mxu0 %v1000
    %1101 = vmatprep.subr.mxu0 0.0
    %1102 = vmatpush1.msra.mxu0 %v999
    %1103 = vmatprep.subr.mxu0 0.0
    %1104 = vmatpush1.msra.mxu0 %v998
    %1105 = vmatprep.subr.mxu0 0.0
    %1106 = vmatpush1.msra.mxu0 %v997
    %1107 = vmatprep.subr.mxu0 0.0
    %1108 = vmatpush1.msra.mxu0 %v996
    %1109 = vmatprep.subr.mxu0 0.0
    %1110 = vmatpush1.msra.mxu0 %v995
    %1111 = vmatprep.subr.mxu0 0.0
    %1112 = vmatpush1.msra.mxu0 %v994
    %1113 = vmatprep.subr.mxu0 0.0
    %1114 = vmatpush1.msra.mxu0 %v993
    %1115 = vmatprep.subr.mxu0 0.0
    %1116 = vmatpush1.msra.mxu0 %v992
    %1117 = vmatprep.subr.mxu0 0.0
    %1118 = vmatpush1.msra.mxu0 %v991
    %1119 = vmatprep.subr.mxu0 0.0
    %1120 = vmatpush1.msra.mxu0 %v990
    %1121 = vmatprep.subr.mxu0 0.0
    %1122 = vmatpush1.msra.mxu0 %v989
    %1123 = vmatprep.subr.mxu0 0.0
    %1124 = vmatpush2.msra.mxu0 0.0
    %1125 = vmatprep.subr.mxu0 0.0
    %1126 = vmatpush2.msra.mxu0 0.0
    %1127 = vmatprep.subr.mxu0 0.0
    %1128 = vmatpush2.msra.mxu0 0.0
    %1129 = vmatprep.subr.mxu0 0.0
    %1130 = vmatpush2.msra.mxu0 0.0
    %1131 = vmatprep.subr.mxu0 0.0
    %1132 = vmatpush2.msra.mxu0 0.0
    %1133 = vmatprep.subr.mxu0 0.0
    %1134 = vmatpush2.msra.mxu0 0.0
    %1135 = vmatprep.subr.mxu0 0.0
    %1136 = vmatpush2.msra.mxu0 0.0
    %1137 = vmatprep.subr.mxu0 0.0
    %1138 = vmatpush2.msra.mxu0 0.0
    %1139 = vmatprep.subr.mxu0 0.0
    %1140 = vmatpush2.msra.mxu0 0.0
    %1141 = vmatprep.subr.mxu0 0.0
    %1142 = vmatpush2.msra.mxu0 0.0
    %1143 = vmatprep.subr.mxu0 0.0
    %1144 = vmatpush2.msra.mxu0 0.0
    %1145 = vmatprep.subr.mxu0 0.0
    %1146 = vmatpush2.msra.mxu0 0.0
    %1147 = vmatprep.subr.mxu0 0.0
    %1148 = vmatpush2.msra.mxu0 0.0
    %1149 = vmatprep.subr.mxu0 0.0
    %1150 = vmatpush2.msra.mxu0 0.0
    %1151 = vmatprep.subr.mxu0 0.0
    %1152 = vmatpush2.msra.mxu0 0.0
    %1153 = vmatprep.subr.mxu0 0.0
    %1154 = vmatpush2.msra.mxu0 0.0
    %1155 = vmatprep.mubr.f32.mxu0 0.0
    %1156 = vmatmul.mubr.f32.gmra.mxu0 %v1085
    %v1157 = vpop.f32.mrf.mxu0
    %v1158 = vadd.f32 %v1090, %v1157
    %v1159 = vpop.f32.mrf.mxu0
    %1160 = vdwg.mxu0
    %1161 = vst [vmem:[%s4] sm:$0xff] %v1158
    // Predicated region
    $region22: #{music_rnn_forward.1} parent=1 // pred_check
      _
    $region23: #{music_rnn_forward.1} parent=1 // pred_check_branch
      %1163 = sbr.rel (0) target = $region25
    $region24: #{music_rnn_forward.1} parent=1 // pred_region
      _
    $region25: #{music_rnn_forward.1} parent=1 // pred_fallthru
      _
    // Predicated region
    $region26: #{music_rnn_forward.1} parent=1 // pred_check
      _
    $region27: #{music_rnn_forward.1} parent=1 // pred_check_branch
      %1165 = sbr.rel (0) target = $region29
    $region28: #{music_rnn_forward.1} parent=1 // pred_region
      _
    $region29: #{music_rnn_forward.1} parent=1 // pred_fallthru
      _
    %1166 = vsyncpa [#allocation3], 1

</llo_original>
